<compile_context>
chip_gen: v7x
topology: tpu7x:2x2x1
jax: 0.10.0
libtpu: 0.0.40
codegen_flags: <defaults>
</compile_context>

<pallas_src>
import jax
import jax.numpy as jnp
from jax.experimental import pallas as pl
from jax.experimental.pallas import tpu as pltpu


_LANE = 128
_MAX_TB = 32768  # batch lanes per grid step (~4 MiB double-buffered VMEM/step)


def _nao_brain_kernel(xt_ref, w1t_ref, b1t_ref, wct_ref, bct_ref, out_ref):
    """Lane-dense (batch-in-lanes) fused forward.

    xt_ref  : [In, TB]     activations, batch on the 128-wide lane axis
    w1t_ref : [H, In]      fc1 weight (transposed)
    b1t_ref : [H, 1]       fc1 bias
    wct_ref : [Out+1, H]   fc_mu / fc_sigma weights stacked (transposed)
    bct_ref : [Out+1, 1]   fc_mu / fc_sigma biases stacked
    out_ref : [Out+1, TB]  packed output: mu rows, then the sigma row
    """
    xt = xt_ref[...]                               # [In, TB]
    w1t = w1t_ref[...]                             # [H, In]
    wct = wct_ref[...]                             # [P, H]
    in_size = xt.shape[0]
    hidden = w1t.shape[0]
    packed_n = wct.shape[0]
    tb = xt.shape[1]
    out_size = packed_n - 1

    # ---- fc1 on the VPU: hT = relu(b1 + sum_i w1[:, i] (x) xT[i, :]) ----
    # xT[i, :] is a natural sublane row (no per-iteration cross-lane extract
    # of activation data); only the tiny constant weight column is lane-sliced.
    acc = jnp.broadcast_to(b1t_ref[...], (hidden, tb))
    for i in range(in_size):                       # static unroll (In == 2)
        acc = acc + w1t[:, i:i + 1] * xt[i:i + 1, :]
    ht = jnp.maximum(acc, 0.0)                     # [H, TB]

    # ---- merged heads on the VPU: yT = bc + sum_j wc[:, j] (x) hT[j, :] ----
    y = jnp.broadcast_to(bct_ref[...], (packed_n, tb))
    for j in range(hidden):                        # static unroll (H == 10)
        y = y + wct[:, j:j + 1] * ht[j:j + 1, :]

    # exp only on the sigma row (last row); mu rows stored untouched.
    out_ref[0:out_size, :] = y[0:out_size, :]
    out_ref[out_size:packed_n, :] = jnp.exp(y[out_size:packed_n, :])


def _batch_tiling(batch):
    """Return (tile, n_steps, padded_batch); tile is a multiple of 128 lanes."""
    b128 = -(-batch // _LANE) * _LANE
    if b128 <= _MAX_TB:
        return b128, 1, b128
    n_steps = -(-b128 // _MAX_TB)
    per_step = -(-b128 // n_steps)
    tile = -(-per_step // _LANE) * _LANE           # <= _MAX_TB by construction
    return tile, n_steps, tile * n_steps


def nao_brain_forward(x, params):
    """Fused forward pass. Returns (mu, sigma) with sigma broadcast to mu's shape."""
    w1, b1, w_mu, b_mu, w_sigma, b_sigma = params
    batch, in_size = x.shape
    hidden = w1.shape[1]
    out_size = w_mu.shape[1]
    packed_n = out_size + 1

    # Lane-dense layout plumbing (wrapper-side; free under jit/XLA).
    xt = x.T                                                  # [In, B]
    w1t = w1.T                                                # [H, In]
    b1t = b1.T                                                # [H, 1]
    wct = jnp.concatenate([w_mu, w_sigma], axis=1).T          # [Out+1, H]
    bct = jnp.concatenate([b_mu, b_sigma], axis=1).T          # [Out+1, 1]

    tile, n_steps, padded_b = _batch_tiling(batch)
    if padded_b != batch:
        # Pad batch lanes instead of falling back to one full-array block.
        xt = jnp.pad(xt, ((0, 0), (0, padded_b - batch)))

    cost = pl.CostEstimate(
        flops=2 * padded_b * (in_size * hidden + hidden * packed_n),
        transcendentals=padded_b,  # exp applied to the sigma row only
        bytes_accessed=4 * (padded_b * in_size + padded_b * packed_n
                            + in_size * hidden + hidden
                            + hidden * packed_n + packed_n),
    )

    packed = pl.pallas_call(
        _nao_brain_kernel,
        out_shape=jax.ShapeDtypeStruct((packed_n, padded_b), jnp.float32),
        grid=(n_steps,),
        in_specs=[
            pl.BlockSpec((in_size, tile), lambda i: (0, i)),      # x^T (batch-lane tiled)
            pl.BlockSpec((hidden, in_size), lambda i: (0, 0)),    # w1^T (resident)
            pl.BlockSpec((hidden, 1), lambda i: (0, 0)),          # b1^T
            pl.BlockSpec((packed_n, hidden), lambda i: (0, 0)),   # [w_mu | w_sigma]^T
            pl.BlockSpec((packed_n, 1), lambda i: (0, 0)),        # [b_mu | b_sigma]^T
        ],
        out_specs=pl.BlockSpec((packed_n, tile), lambda i: (0, i)),
        compiler_params=pltpu.CompilerParams(
            dimension_semantics=("parallel",),
            vmem_limit_bytes=32 * 1024 * 1024,
        ),
        cost_estimate=cost,
    )(xt, w1t, b1t, wct, bct)

    mu = packed[:out_size, :batch].T                          # [B, Out]
    sigma = packed[out_size:, :batch].T                       # [B, 1]
    # Normal(mu, sigma) broadcasts sigma against mu; broadcasting here is free
    # XLA metadata (nothing materialized in-kernel).
    return mu, jnp.broadcast_to(sigma, mu.shape)


def init_params(key, input_size=2, output_size=2, hidden_size=10):
    """Deterministic init mirroring torch.nn.Linear (uniform +/- 1/sqrt(fan_in)).

    Weights are stored as [in, out] (transposed vs torch), biases as [1, out].
    """
    k1, k2, k3, k4, k5, k6 = jax.random.split(key, 6)

    def lin(kw, kb, fan_in, fan_out):
        bound = 1.0 / jnp.sqrt(float(fan_in))
        w = jax.random.uniform(kw, (fan_in, fan_out), jnp.float32, -bound, bound)
        b = jax.random.uniform(kb, (1, fan_out), jnp.float32, -bound, bound)
        return w, b

    w1, b1 = lin(k1, k2, input_size, hidden_size)
    w_mu, b_mu = lin(k3, k4, hidden_size, output_size)
    w_sg, b_sg = lin(k5, k6, hidden_size, 1)
    return (w1, b1, w_mu, b_mu, w_sg, b_sg)


def reference_forward(x, params):
    """Pure-JAX reference for correctness checking."""
    w1, b1, w_mu, b_mu, w_sg, b_sg = params
    h = jnp.maximum(x @ w1 + b1, 0.0)
    mu = h @ w_mu + b_mu
    sigma = jnp.exp(h @ w_sg + b_sg)
    return mu, jnp.broadcast_to(sigma, mu.shape)


if __name__ == "__main__":
    input_size, output_size, hidden_size = 2, 2, 10
    batch = 8

    key = jax.random.PRNGKey(0)
    kx, kp = jax.random.split(key)
    x = jax.random.normal(kx, (batch, input_size), jnp.float32)
    params = init_params(kp, input_size, output_size, hidden_size)

    mu, sigma = nao_brain_forward(x, params)
    mu = jax.block_until_ready(mu)
    sigma = jax.block_until_ready(sigma)

    mu_ref, sigma_ref = reference_forward(x, params)
    assert mu.shape == (batch, output_size)
    assert sigma.shape == (batch, output_size)
    assert jnp.allclose(mu, mu_ref, atol=1e-5, rtol=1e-5)
    assert jnp.allclose(sigma, sigma_ref, atol=1e-5, rtol=1e-5)
    assert bool(jnp.all(sigma > 0.0))

    # TODO(synk): torch.distributions.Normal object itself has no Pallas
    # equivalent; we return its parameters (mu, sigma) instead.
    print("KERNEL_OK")
</pallas_src>

<mosaic_0001>
module attributes {stable_mosaic.version = 11 : i64} {
  func.func @_nao_brain_kernel(%arg0: i32, %arg1: memref<2x128xf32, #tpu.memory_space<vmem>>, %arg2: memref<10x2xf32, #tpu.memory_space<vmem>>, %arg3: memref<10x1xf32, #tpu.memory_space<vmem>>, %arg4: memref<3x10xf32, #tpu.memory_space<vmem>>, %arg5: memref<3x1xf32, #tpu.memory_space<vmem>>, %arg6: memref<3x128xf32, #tpu.memory_space<vmem>>) attributes {dimension_semantics = [#tpu.dimension_semantics<parallel>], iteration_bounds = array<i64: 1>, scalar_prefetch = 0 : i64, scratch_operands = 0 : i64, tpu.core_type = #tpu.core_type<tc>, window_params = [{transform_indices = @transform_0, window_bounds = array<i64: 2, 128>}, {pipeline_mode = #tpu.pipeline_mode<synchronous>, transform_indices = @transform_1, window_bounds = array<i64: 10, 2>}, {pipeline_mode = #tpu.pipeline_mode<synchronous>, transform_indices = @transform_2, window_bounds = array<i64: 10, 1>}, {pipeline_mode = #tpu.pipeline_mode<synchronous>, transform_indices = @transform_3, window_bounds = array<i64: 3, 10>}, {pipeline_mode = #tpu.pipeline_mode<synchronous>, transform_indices = @transform_4, window_bounds = array<i64: 3, 1>}, {transform_indices = @transform_5, window_bounds = array<i64: 3, 128>}]} {
    %c0 = arith.constant 0 : index
    %c0_0 = arith.constant 0 : index
    %0 = vector.load %arg1[%c0, %c0_0] : memref<2x128xf32, #tpu.memory_space<vmem>>, vector<2x128xf32>
    %c0_1 = arith.constant 0 : index
    %c0_2 = arith.constant 0 : index
    %1 = vector.load %arg2[%c0_1, %c0_2] : memref<10x2xf32, #tpu.memory_space<vmem>>, vector<10x2xf32>
    %c0_3 = arith.constant 0 : index
    %c0_4 = arith.constant 0 : index
    %2 = vector.load %arg4[%c0_3, %c0_4] : memref<3x10xf32, #tpu.memory_space<vmem>>, vector<3x10xf32>
    %c0_5 = arith.constant 0 : index
    %c0_6 = arith.constant 0 : index
    %3 = vector.load %arg3[%c0_5, %c0_6] : memref<10x1xf32, #tpu.memory_space<vmem>>, vector<10x1xf32>
    %4 = vector.shape_cast %3 : vector<10x1xf32> to vector<10x1xf32>
    %5 = vector.broadcast %4 : vector<10x1xf32> to vector<10x128xf32>
    %6 = vector.extract_strided_slice %1 {offsets = [0, 0], sizes = [10, 1], strides = [1, 1]} : vector<10x2xf32> to vector<10x1xf32>
    %7 = vector.extract_strided_slice %0 {offsets = [0, 0], sizes = [1, 128], strides = [1, 1]} : vector<2x128xf32> to vector<1x128xf32>
    %8 = vector.broadcast %6 : vector<10x1xf32> to vector<10x128xf32>
    %9 = vector.broadcast %7 : vector<1x128xf32> to vector<10x128xf32>
    %10 = arith.mulf %8, %9 : vector<10x128xf32>
    %11 = arith.addf %5, %10 : vector<10x128xf32>
    %12 = vector.extract_strided_slice %1 {offsets = [0, 1], sizes = [10, 1], strides = [1, 1]} : vector<10x2xf32> to vector<10x1xf32>
    %13 = vector.extract_strided_slice %0 {offsets = [1, 0], sizes = [1, 128], strides = [1, 1]} : vector<2x128xf32> to vector<1x128xf32>
    %14 = vector.broadcast %12 : vector<10x1xf32> to vector<10x128xf32>
    %15 = vector.broadcast %13 : vector<1x128xf32> to vector<10x128xf32>
    %16 = arith.mulf %14, %15 : vector<10x128xf32>
    %17 = arith.addf %11, %16 : vector<10x128xf32>
    %cst = arith.constant 0.000000e+00 : f32
    %18 = vector.broadcast %cst : f32 to vector<10x128xf32>
    %19 = arith.maximumf %17, %18 : vector<10x128xf32>
    %c0_7 = arith.constant 0 : index
    %c0_8 = arith.constant 0 : index
    %20 = vector.load %arg5[%c0_7, %c0_8] : memref<3x1xf32, #tpu.memory_space<vmem>>, vector<3x1xf32>
    %21 = vector.shape_cast %20 : vector<3x1xf32> to vector<3x1xf32>
    %22 = vector.broadcast %21 : vector<3x1xf32> to vector<3x128xf32>
    %23 = vector.extract_strided_slice %2 {offsets = [0, 0], sizes = [3, 1], strides = [1, 1]} : vector<3x10xf32> to vector<3x1xf32>
    %24 = vector.extract_strided_slice %19 {offsets = [0, 0], sizes = [1, 128], strides = [1, 1]} : vector<10x128xf32> to vector<1x128xf32>
    %25 = vector.broadcast %23 : vector<3x1xf32> to vector<3x128xf32>
    %26 = vector.broadcast %24 : vector<1x128xf32> to vector<3x128xf32>
    %27 = arith.mulf %25, %26 : vector<3x128xf32>
    %28 = arith.addf %22, %27 : vector<3x128xf32>
    %29 = vector.extract_strided_slice %2 {offsets = [0, 1], sizes = [3, 1], strides = [1, 1]} : vector<3x10xf32> to vector<3x1xf32>
    %30 = vector.extract_strided_slice %19 {offsets = [1, 0], sizes = [1, 128], strides = [1, 1]} : vector<10x128xf32> to vector<1x128xf32>
    %31 = vector.broadcast %29 : vector<3x1xf32> to vector<3x128xf32>
    %32 = vector.broadcast %30 : vector<1x128xf32> to vector<3x128xf32>
    %33 = arith.mulf %31, %32 : vector<3x128xf32>
    %34 = arith.addf %28, %33 : vector<3x128xf32>
    %35 = vector.extract_strided_slice %2 {offsets = [0, 2], sizes = [3, 1], strides = [1, 1]} : vector<3x10xf32> to vector<3x1xf32>
    %36 = vector.extract_strided_slice %19 {offsets = [2, 0], sizes = [1, 128], strides = [1, 1]} : vector<10x128xf32> to vector<1x128xf32>
    %37 = vector.broadcast %35 : vector<3x1xf32> to vector<3x128xf32>
    %38 = vector.broadcast %36 : vector<1x128xf32> to vector<3x128xf32>
    %39 = arith.mulf %37, %38 : vector<3x128xf32>
    %40 = arith.addf %34, %39 : vector<3x128xf32>
    %41 = vector.extract_strided_slice %2 {offsets = [0, 3], sizes = [3, 1], strides = [1, 1]} : vector<3x10xf32> to vector<3x1xf32>
    %42 = vector.extract_strided_slice %19 {offsets = [3, 0], sizes = [1, 128], strides = [1, 1]} : vector<10x128xf32> to vector<1x128xf32>
    %43 = vector.broadcast %41 : vector<3x1xf32> to vector<3x128xf32>
    %44 = vector.broadcast %42 : vector<1x128xf32> to vector<3x128xf32>
    %45 = arith.mulf %43, %44 : vector<3x128xf32>
    %46 = arith.addf %40, %45 : vector<3x128xf32>
    %47 = vector.extract_strided_slice %2 {offsets = [0, 4], sizes = [3, 1], strides = [1, 1]} : vector<3x10xf32> to vector<3x1xf32>
    %48 = vector.extract_strided_slice %19 {offsets = [4, 0], sizes = [1, 128], strides = [1, 1]} : vector<10x128xf32> to vector<1x128xf32>
    %49 = vector.broadcast %47 : vector<3x1xf32> to vector<3x128xf32>
    %50 = vector.broadcast %48 : vector<1x128xf32> to vector<3x128xf32>
    %51 = arith.mulf %49, %50 : vector<3x128xf32>
    %52 = arith.addf %46, %51 : vector<3x128xf32>
    %53 = vector.extract_strided_slice %2 {offsets = [0, 5], sizes = [3, 1], strides = [1, 1]} : vector<3x10xf32> to vector<3x1xf32>
    %54 = vector.extract_strided_slice %19 {offsets = [5, 0], sizes = [1, 128], strides = [1, 1]} : vector<10x128xf32> to vector<1x128xf32>
    %55 = vector.broadcast %53 : vector<3x1xf32> to vector<3x128xf32>
    %56 = vector.broadcast %54 : vector<1x128xf32> to vector<3x128xf32>
    %57 = arith.mulf %55, %56 : vector<3x128xf32>
    %58 = arith.addf %52, %57 : vector<3x128xf32>
    %59 = vector.extract_strided_slice %2 {offsets = [0, 6], sizes = [3, 1], strides = [1, 1]} : vector<3x10xf32> to vector<3x1xf32>
    %60 = vector.extract_strided_slice %19 {offsets = [6, 0], sizes = [1, 128], strides = [1, 1]} : vector<10x128xf32> to vector<1x128xf32>
    %61 = vector.broadcast %59 : vector<3x1xf32> to vector<3x128xf32>
    %62 = vector.broadcast %60 : vector<1x128xf32> to vector<3x128xf32>
    %63 = arith.mulf %61, %62 : vector<3x128xf32>
    %64 = arith.addf %58, %63 : vector<3x128xf32>
    %65 = vector.extract_strided_slice %2 {offsets = [0, 7], sizes = [3, 1], strides = [1, 1]} : vector<3x10xf32> to vector<3x1xf32>
    %66 = vector.extract_strided_slice %19 {offsets = [7, 0], sizes = [1, 128], strides = [1, 1]} : vector<10x128xf32> to vector<1x128xf32>
    %67 = vector.broadcast %65 : vector<3x1xf32> to vector<3x128xf32>
    %68 = vector.broadcast %66 : vector<1x128xf32> to vector<3x128xf32>
    %69 = arith.mulf %67, %68 : vector<3x128xf32>
    %70 = arith.addf %64, %69 : vector<3x128xf32>
    %71 = vector.extract_strided_slice %2 {offsets = [0, 8], sizes = [3, 1], strides = [1, 1]} : vector<3x10xf32> to vector<3x1xf32>
    %72 = vector.extract_strided_slice %19 {offsets = [8, 0], sizes = [1, 128], strides = [1, 1]} : vector<10x128xf32> to vector<1x128xf32>
    %73 = vector.broadcast %71 : vector<3x1xf32> to vector<3x128xf32>
    %74 = vector.broadcast %72 : vector<1x128xf32> to vector<3x128xf32>
    %75 = arith.mulf %73, %74 : vector<3x128xf32>
    %76 = arith.addf %70, %75 : vector<3x128xf32>
    %77 = vector.extract_strided_slice %2 {offsets = [0, 9], sizes = [3, 1], strides = [1, 1]} : vector<3x10xf32> to vector<3x1xf32>
    %78 = vector.extract_strided_slice %19 {offsets = [9, 0], sizes = [1, 128], strides = [1, 1]} : vector<10x128xf32> to vector<1x128xf32>
    %79 = vector.broadcast %77 : vector<3x1xf32> to vector<3x128xf32>
    %80 = vector.broadcast %78 : vector<1x128xf32> to vector<3x128xf32>
    %81 = arith.mulf %79, %80 : vector<3x128xf32>
    %82 = arith.addf %76, %81 : vector<3x128xf32>
    %83 = vector.extract_strided_slice %82 {offsets = [0, 0], sizes = [2, 128], strides = [1, 1]} : vector<3x128xf32> to vector<2x128xf32>
    %c0_9 = arith.constant 0 : index
    %c0_10 = arith.constant 0 : index
    %84 = vector.load %arg6[%c0_9, %c0_10] : memref<3x128xf32, #tpu.memory_space<vmem>>, vector<2x128xf32>
    tpu.vector_store %arg6[%c0_9, %c0_10], %83 {strides = array<i32>} : memref<3x128xf32, #tpu.memory_space<vmem>>, vector<2x128xf32>,
    %85 = vector.extract_strided_slice %82 {offsets = [2, 0], sizes = [1, 128], strides = [1, 1]} : vector<3x128xf32> to vector<1x128xf32>
    %86 = math.exp %85 : vector<1x128xf32>
    %c2 = arith.constant 2 : index
    %c0_11 = arith.constant 0 : index
    %87 = vector.load %arg6[%c2, %c0_11] : memref<3x128xf32, #tpu.memory_space<vmem>>, vector<1x128xf32>
    tpu.vector_store %arg6[%c2, %c0_11], %86 {strides = array<i32>} : memref<3x128xf32, #tpu.memory_space<vmem>>, vector<1x128xf32>,
    return
  }
  func.func @transform_0(%arg0: i32) -> (i32, i32) {
    %c0_i32 = arith.constant 0 : i32
    %c0_i32_0 = arith.constant 0 : i32
    return %c0_i32, %arg0 : i32, i32
  }
  func.func @transform_1(%arg0: i32) -> (i32, i32) {
    %c0_i32 = arith.constant 0 : i32
    %c0_i32_0 = arith.constant 0 : i32
    %c0_i32_1 = arith.constant 0 : i32
    return %c0_i32, %c0_i32_0 : i32, i32
  }
  func.func @transform_2(%arg0: i32) -> (i32, i32) {
    %c0_i32 = arith.constant 0 : i32
    %c0_i32_0 = arith.constant 0 : i32
    %c0_i32_1 = arith.constant 0 : i32
    return %c0_i32, %c0_i32_0 : i32, i32
  }
  func.func @transform_3(%arg0: i32) -> (i32, i32) {
    %c0_i32 = arith.constant 0 : i32
    %c0_i32_0 = arith.constant 0 : i32
    %c0_i32_1 = arith.constant 0 : i32
    return %c0_i32, %c0_i32_0 : i32, i32
  }
  func.func @transform_4(%arg0: i32) -> (i32, i32) {
    %c0_i32 = arith.constant 0 : i32
    %c0_i32_0 = arith.constant 0 : i32
    %c0_i32_1 = arith.constant 0 : i32
    return %c0_i32, %c0_i32_0 : i32, i32
  }
  func.func @transform_5(%arg0: i32) -> (i32, i32) {
    %c0_i32 = arith.constant 0 : i32
    %c0_i32_0 = arith.constant 0 : i32
    return %c0_i32, %arg0 : i32, i32
  }
}

</mosaic_0001>

<llo_original>
// kernel: tpu_custom_call.1
$region0: #{tpu_custom_call.1}
  #allocation0 [shape = 'u32[]', space=smem, size = 0x4, offset = 0x4, fixed_abs, tag = 'smem constant byte address 0x4 - core index']
  #allocation1 [shape = 'u32[144,128]{1,0:T(1,128)}', space=vmem, size = 0x12000, scoped, tag = 'internal scratch']
  %s0 = inlined_call_operand.vmem [shape: f32[2,128], index: 0, kind: input, shape index: {}]
  %s1 = inlined_call_operand.vmem [shape: f32[10,2], index: 1, kind: input, shape index: {}]
  %s2 = inlined_call_operand.vmem [shape: f32[10,1], index: 2, kind: input, shape index: {}]
  %s3 = inlined_call_operand.vmem [shape: f32[3,10], index: 3, kind: input, shape index: {}]
  %s4 = inlined_call_operand.vmem [shape: f32[3,1], index: 4, kind: input, shape index: {}]
  %s5 = inlined_call_operand.hbm [shape: f32[3,128], index: 5, kind: output, shape index: {}]
  %s6 = sld [smem:[#allocation0]]
  $region30: #{tpu_custom_call.1} parent=0
    _
  %s8 = ssub.s32 1, %s6
  %s9 = scalar_select 0, %s8, %s6
  $region1: #{tpu_custom_call.1} parent=0
    #allocation2 [shape = 'u8[2048]{0}', space=vmem, size = 0x800, scoped, tag = 'output window, operand 0, single buffered']
    #allocation3 [shape = 's32[1]{0}', space=sflag, size = 0x4, scoped, tag = 'scoped memory for tpu_custom_call.1']
    %10 = vsyncpa [#allocation3], 0
    // Predicated region
    $region2: #{tpu_custom_call.1} parent=1 // pred_check
      _
    $region3: #{tpu_custom_call.1} parent=1 // pred_check_branch
      %12 = sbr.rel (0) target = $region5
    $region4: #{tpu_custom_call.1} parent=1 // pred_region
      _
    $region5: #{tpu_custom_call.1} parent=1 // pred_fallthru
      _
    // Predicated region
    $region6: #{tpu_custom_call.1} parent=1 // pred_check
      _
    $region7: #{tpu_custom_call.1} parent=1 // pred_check_branch
      %14 = sbr.rel (0) target = $region9
    $region8: #{tpu_custom_call.1} parent=1 // pred_region
      _
    $region9: #{tpu_custom_call.1} parent=1 // pred_fallthru
      _
    // Predicated region
    $region10: #{tpu_custom_call.1} parent=1 // pred_check
      _
    $region11: #{tpu_custom_call.1} parent=1 // pred_check_branch
      %16 = sbr.rel (0) target = $region13
    $region12: #{tpu_custom_call.1} parent=1 // pred_region
      _
    $region13: #{tpu_custom_call.1} parent=1 // pred_fallthru
      _
    // Predicated region
    $region14: #{tpu_custom_call.1} parent=1 // pred_check
      _
    $region15: #{tpu_custom_call.1} parent=1 // pred_check_branch
      %18 = sbr.rel (0) target = $region17
    $region16: #{tpu_custom_call.1} parent=1 // pred_region
      _
    $region17: #{tpu_custom_call.1} parent=1 // pred_fallthru
      _
    // Predicated region
    $region18: #{tpu_custom_call.1} parent=1 // pred_check
      _
    $region19: #{tpu_custom_call.1} parent=1 // pred_check_branch
      %20 = sbr.rel (0) target = $region21
    $region20: #{tpu_custom_call.1} parent=1 // pred_region
      _
    $region21: #{tpu_custom_call.1} parent=1 // pred_fallthru
      _
    %v21 = vld [vmem:[%s0] sm:$0x3]
    %v22 = vld [vmem:[%s1] sm:$0xff]
    %v23 = vld [vmem:[%s1 + $0x8] sm:$0x3]
    %v24 = vld [vmem:[%s3] sm:$0x7]
    %v25 = vld [vmem:[%s2] sm:$0xff]
    %v26 = vld [vmem:[%s2 + $0x8] sm:$0x3]
    %28 = vset.pattern.permute.xlu0 0
    %29 = vperm.xlu0 %28, %v25
    %v30 = vpop.permute.xlu0 %29
    %33 = vset.pattern.permute.xlu0 0
    %34 = vperm.xlu0 %33, %v26
    %v35 = vpop.permute.xlu0 %34
    %38 = vset.pattern.permute.xlu0 0
    %39 = vperm.xlu0 %38, %v22
    %v40 = vpop.permute.xlu0 %39
    %43 = vset.pattern.permute.xlu0 0
    %44 = vperm.xlu0 %43, %v23
    %v45 = vpop.permute.xlu0 %44
    %v47 = vlaneseq
    %v48 = vshrl.u32 %v47, 7
    %v49 = vsub.s32 0, %v48
    %v50 = vrot.slane %v21, %v49
    %v51 = vmul.f32 %v40, %v50
    %v52 = vmul.f32 %v45, %v50
    %v53 = vadd.f32 %v30, %v51
    %v54 = vadd.f32 %v35, %v52
    %55 = vset.pattern.permute.xlu0 1
    %56 = vperm.xlu0 %55, %v22
    %v57 = vpop.permute.xlu0 %56
    %59 = vset.pattern.permute.xlu0 1
    %60 = vperm.xlu0 %59, %v23
    %v61 = vpop.permute.xlu0 %60
    %v63 = vlaneseq
    %v64 = vshrl.u32 %v63, 7
    %v65 = vsub.s32 1, %v64
    %v66 = vrot.slane %v21, %v65
    %v67 = vmul.f32 %v57, %v66
    %v68 = vmul.f32 %v61, %v66
    %v69 = vadd.f32 %v53, %v67
    %v70 = vadd.f32 %v54, %v68
    %v71 = vmax.f32 %v69, 0.0
    %v72 = vmax.f32 %v70, 0.0
    %v73 = vld [vmem:[%s4] sm:$0x7]
    %75 = vset.pattern.permute.xlu0 0
    %76 = vperm.xlu0 %75, %v73
    %v77 = vpop.permute.xlu0 %76
    %80 = vset.pattern.permute.xlu0 0
    %81 = vperm.xlu0 %80, %v24
    %v82 = vpop.permute.xlu0 %81
    %v84 = vlaneseq
    %v85 = vshrl.u32 %v84, 7
    %v86 = vsub.s32 0, %v85
    %v87 = vrot.slane %v71, %v86
    %v88 = vmul.f32 %v82, %v87
    %v89 = vadd.f32 %v77, %v88
    %90 = vset.pattern.permute.xlu0 1
    %91 = vperm.xlu0 %90, %v24
    %v92 = vpop.permute.xlu0 %91
    %v94 = vlaneseq
    %v95 = vshrl.u32 %v94, 7
    %v96 = vsub.s32 1, %v95
    %v97 = vrot.slane %v71, %v96
    %v98 = vmul.f32 %v92, %v97
    %v99 = vadd.f32 %v89, %v98
    %100 = vset.pattern.permute.xlu0 2
    %101 = vperm.xlu0 %100, %v24
    %v102 = vpop.permute.xlu0 %101
    %v104 = vlaneseq
    %v105 = vshrl.u32 %v104, 7
    %v106 = vsub.s32 2, %v105
    %v107 = vrot.slane %v71, %v106
    %v108 = vmul.f32 %v102, %v107
    %v109 = vadd.f32 %v99, %v108
    %110 = vset.pattern.permute.xlu0 3
    %111 = vperm.xlu0 %110, %v24
    %v112 = vpop.permute.xlu0 %111
    %v114 = vlaneseq
    %v115 = vshrl.u32 %v114, 7
    %v116 = vsub.s32 3, %v115
    %v117 = vrot.slane %v71, %v116
    %v118 = vmul.f32 %v112, %v117
    %v119 = vadd.f32 %v109, %v118
    %120 = vset.pattern.permute.xlu0 4
    %121 = vperm.xlu0 %120, %v24
    %v122 = vpop.permute.xlu0 %121
    %v124 = vlaneseq
    %v125 = vshrl.u32 %v124, 7
    %v126 = vsub.s32 4, %v125
    %v127 = vrot.slane %v71, %v126
    %v128 = vmul.f32 %v122, %v127
    %v129 = vadd.f32 %v119, %v128
    %130 = vset.pattern.permute.xlu0 5
    %131 = vperm.xlu0 %130, %v24
    %v132 = vpop.permute.xlu0 %131
    %v134 = vlaneseq
    %v135 = vshrl.u32 %v134, 7
    %v136 = vsub.s32 5, %v135
    %v137 = vrot.slane %v71, %v136
    %v138 = vmul.f32 %v132, %v137
    %v139 = vadd.f32 %v129, %v138
    %140 = vset.pattern.permute.xlu0 6
    %141 = vperm.xlu0 %140, %v24
    %v142 = vpop.permute.xlu0 %141
    %v144 = vlaneseq
    %v145 = vshrl.u32 %v144, 7
    %v146 = vsub.s32 6, %v145
    %v147 = vrot.slane %v71, %v146
    %v148 = vmul.f32 %v142, %v147
    %v149 = vadd.f32 %v139, %v148
    %150 = vset.pattern.permute.xlu0 7
    %151 = vperm.xlu0 %150, %v24
    %v152 = vpop.permute.xlu0 %151
    %v154 = vlaneseq
    %v155 = vshrl.u32 %v154, 7
    %v156 = vsub.s32 7, %v155
    %v157 = vrot.slane %v71, %v156
    %v158 = vmul.f32 %v152, %v157
    %v159 = vadd.f32 %v149, %v158
    %160 = vset.pattern.permute.xlu0 8
    %161 = vperm.xlu0 %160, %v24
    %v162 = vpop.permute.xlu0 %161
    %v164 = vlaneseq
    %v165 = vshrl.u32 %v164, 7
    %v166 = vsub.s32 0, %v165
    %v167 = vrot.slane %v72, %v166
    %v168 = vmul.f32 %v162, %v167
    %v169 = vadd.f32 %v159, %v168
    %170 = vset.pattern.permute.xlu0 9
    %171 = vperm.xlu0 %170, %v24
    %v172 = vpop.permute.xlu0 %171
    %v174 = vlaneseq
    %v175 = vshrl.u32 %v174, 7
    %v176 = vsub.s32 1, %v175
    %v177 = vrot.slane %v72, %v176
    %v178 = vmul.f32 %v172, %v177
    %v179 = vadd.f32 %v169, %v178
    %180 = vst [vmem:[#allocation2] sm:$0x3] %v179
    %v181 = vmul.f32 %v179, 1.442695
    %v182 = vpow.pop %v181
    %183 = vst [vmem:[#allocation2] sm:$0x4] %v182
    // Predicated region
    $region22: #{tpu_custom_call.1} parent=1 // pred_check
      _
    $region23: #{tpu_custom_call.1} parent=1 // pred_check_branch
      %185 = sbr.rel (0) target = $region25
    $region24: #{tpu_custom_call.1} parent=1 // pred_region
      %s187 = ssub.s32 64, 64
      %188 = vsyncadd [#allocation3], %s187
      %s190 = sshll.u32 [#allocation2], 4
      %s191 = int_to_ptr.vmem [resolvable:$true] %s190
      %193 = dma.vmem_to_hbm [thread:$0]  %s191, 64, %s5, [#allocation3]
    $region25: #{tpu_custom_call.1} parent=1 // pred_fallthru
      _
    // Predicated region
    $region26: #{tpu_custom_call.1} parent=1 // pred_check
      _
    $region27: #{tpu_custom_call.1} parent=1 // pred_check_branch
      %195 = sbr.rel (0) target = $region29
    $region28: #{tpu_custom_call.1} parent=1 // pred_region
      %196 = dma.done [#allocation3], 64
    $region29: #{tpu_custom_call.1} parent=1 // pred_fallthru
      _
    %197 = vsyncpa [#allocation3], 1

</llo_original>
